<compile_context>
chip_gen: v6e
topology: v6e:2x2x1
jax: 0.10.0
libtpu: 0.0.40
codegen_flags: <defaults>
</compile_context>

<pallas_src>
import math
import functools

import jax
import jax.numpy as jnp
from jax.experimental import pallas as pl
from jax.experimental.pallas import tpu as pltpu

IN_DIM = 200
IN_DIM_PAD = 256          # lane-aligned K for layer 1
OUT_DIM = 6
OUT_DIM_PAD = 128         # lane-dense output store
HIDDEN = (64, 32, 16)
DEFAULT_TILE_B = 512      # ~85% of HBM roofline per measured tiled-f32 data


def _round_up(x, m):
    return ((x + m - 1) // m) * m


def _mlp_kernel(x_ref,
                w1_ref, b1_ref,
                w2_ref, b2_ref,
                w3_ref, b3_ref,
                w4_ref, b4_ref,
                o_ref):
    """One batch tile of the fused 4-layer MLP. Weights are VMEM-resident."""
    x = x_ref[...]

    h = jnp.dot(x, w1_ref[...], preferred_element_type=jnp.float32) + b1_ref[...]
    h = jnp.maximum(h, 0.0)

    h = jnp.dot(h, w2_ref[...], preferred_element_type=jnp.float32) + b2_ref[...]
    h = jnp.maximum(h, 0.0)

    h = jnp.dot(h, w3_ref[...], preferred_element_type=jnp.float32) + b3_ref[...]
    h = jnp.maximum(h, 0.0)

    # w4/b4 are zero-padded to 128 columns -> lane-dense (TILE_B, 128) store.
    out = jnp.dot(h, w4_ref[...], preferred_element_type=jnp.float32) + b4_ref[...]
    o_ref[...] = out.astype(o_ref.dtype)


def prepare_params(params):
    """Pad params once: w1 (200,64)->(256,64) zero rows; w4 (16,6)->(16,128) zero cols."""
    p = dict(params)
    p["w1"] = jnp.pad(params["w1"], ((0, IN_DIM_PAD - IN_DIM), (0, 0)))
    p["w4"] = jnp.pad(params["w4"], ((0, 0), (0, OUT_DIM_PAD - OUT_DIM)))
    p["b4"] = jnp.pad(params["b4"], ((0, 0), (0, OUT_DIM_PAD - OUT_DIM)))
    return p


@functools.partial(jax.jit, static_argnames=("tile_b",))
def dqn_simple_forward(x, padded_params, *, tile_b=DEFAULT_TILE_B):
    """x: (B, 200) f32. padded_params: output of prepare_params. Returns (B, 6)."""
    B = x.shape[0]

    # Choose batch tile: big batches -> 512-row tiles; small batches -> one tile
    # rounded up to a sublane multiple (8).
    tb = tile_b if B >= tile_b else _round_up(max(B, 1), 8)
    Bp = _round_up(B, tb)

    # Host-side padding: batch -> Bp rows, features 200 -> 256 lanes (zeros).
    x_p = jnp.pad(x, ((0, Bp - B), (0, IN_DIM_PAD - IN_DIM)))

    p = padded_params
    grid = (Bp // tb,)

    const = lambda i: (0, 0)           # parameters: same block every grid step (resident)
    batch_map = lambda i: (i, 0)

    flops = 2 * Bp * (IN_DIM_PAD * HIDDEN[0]
                      + HIDDEN[0] * HIDDEN[1]
                      + HIDDEN[1] * HIDDEN[2]
                      + HIDDEN[2] * OUT_DIM_PAD)
    param_bytes = sum(int(v.size) * 4 for v in p.values())
    bytes_accessed = Bp * (IN_DIM_PAD + OUT_DIM_PAD) * 4 + param_bytes

    out_padded = pl.pallas_call(
        _mlp_kernel,
        out_shape=jax.ShapeDtypeStruct((Bp, OUT_DIM_PAD), jnp.float32),
        grid=grid,
        in_specs=[
            pl.BlockSpec((tb, IN_DIM_PAD), batch_map),                # x tile (pipelined)
            pl.BlockSpec((IN_DIM_PAD, HIDDEN[0]), const),             # w1
            pl.BlockSpec((1, HIDDEN[0]), const),                      # b1
            pl.BlockSpec((HIDDEN[0], HIDDEN[1]), const),              # w2
            pl.BlockSpec((1, HIDDEN[1]), const),                      # b2
            pl.BlockSpec((HIDDEN[1], HIDDEN[2]), const),              # w3
            pl.BlockSpec((1, HIDDEN[2]), const),                      # b3
            pl.BlockSpec((HIDDEN[2], OUT_DIM_PAD), const),            # w4 (col-padded)
            pl.BlockSpec((1, OUT_DIM_PAD), const),                    # b4 (col-padded)
        ],
        out_specs=pl.BlockSpec((tb, OUT_DIM_PAD), batch_map),
        compiler_params=pltpu.CompilerParams(
            dimension_semantics=("parallel",),                        # 2x on v7x megacore
        ),
        cost_estimate=pl.CostEstimate(
            flops=flops, transcendentals=0, bytes_accessed=bytes_accessed),
    )(
        x_p,
        p["w1"], p["b1"],
        p["w2"], p["b2"],
        p["w3"], p["b3"],
        p["w4"], p["b4"],
    )

    return out_padded[:B, :OUT_DIM]


def _xavier_uniform(key, fan_in, fan_out):
    # Matches torch.nn.init.xavier_uniform_ (gain=1): U(-a, a), a = sqrt(6/(fan_in+fan_out)).
    a = math.sqrt(6.0 / (fan_in + fan_out))
    return jax.random.uniform(key, (fan_in, fan_out), jnp.float32, minval=-a, maxval=a)


def init_params(key):
    dims = [IN_DIM, *HIDDEN, OUT_DIM]
    keys = jax.random.split(key, 4)
    params = {}
    for i, (din, dout) in enumerate(zip(dims[:-1], dims[1:]), start=1):
        params[f"w{i}"] = _xavier_uniform(keys[i - 1], din, dout)
        params[f"b{i}"] = jnp.zeros((1, dout), jnp.float32)  # nn.init.constant_(bias, 0)
    return params


if __name__ == "__main__":
    key = jax.random.PRNGKey(0)
    pkey, xkey = jax.random.split(key)

    params = init_params(pkey)
    padded_params = prepare_params(params)

    x = jax.random.normal(xkey, (2, IN_DIM), jnp.float32)  # (batch=2, features=200)

    out = dqn_simple_forward(x, padded_params)
    out = jax.block_until_ready(out)

    # Pure-JAX reference of the same forward pass (un-padded params).
    ref = x
    for i in range(1, 5):
        ref = ref @ params[f"w{i}"] + params[f"b{i}"]
        if i < 4:
            ref = jnp.maximum(ref, 0.0)

    assert out.shape == (2, OUT_DIM)
    assert jnp.allclose(out, ref, atol=1e-5, rtol=1e-5)

    print("KERNEL_OK")
</pallas_src>

<mosaic_0001>
module attributes {stable_mosaic.version = 11 : i64} {
  func.func @_mlp_kernel(%arg0: i32, %arg1: memref<8x256xf32, #tpu.memory_space<vmem>>, %arg2: memref<256x64xf32, #tpu.memory_space<vmem>>, %arg3: memref<1x64xf32, #tpu.memory_space<vmem>>, %arg4: memref<64x32xf32, #tpu.memory_space<vmem>>, %arg5: memref<1x32xf32, #tpu.memory_space<vmem>>, %arg6: memref<32x16xf32, #tpu.memory_space<vmem>>, %arg7: memref<1x16xf32, #tpu.memory_space<vmem>>, %arg8: memref<16x128xf32, #tpu.memory_space<vmem>>, %arg9: memref<1x128xf32, #tpu.memory_space<vmem>>, %arg10: memref<8x128xf32, #tpu.memory_space<vmem>>) attributes {dimension_semantics = [#tpu.dimension_semantics<parallel>], iteration_bounds = array<i64: 1>, scalar_prefetch = 0 : i64, scratch_operands = 0 : i64, tpu.core_type = #tpu.core_type<tc>, window_params = [{transform_indices = @transform_0, window_bounds = array<i64: 8, 256>}, {pipeline_mode = #tpu.pipeline_mode<synchronous>, transform_indices = @transform_1, window_bounds = array<i64: 256, 64>}, {pipeline_mode = #tpu.pipeline_mode<synchronous>, transform_indices = @transform_2, window_bounds = array<i64: 1, 64>}, {pipeline_mode = #tpu.pipeline_mode<synchronous>, transform_indices = @transform_3, window_bounds = array<i64: 64, 32>}, {pipeline_mode = #tpu.pipeline_mode<synchronous>, transform_indices = @transform_4, window_bounds = array<i64: 1, 32>}, {pipeline_mode = #tpu.pipeline_mode<synchronous>, transform_indices = @transform_5, window_bounds = array<i64: 32, 16>}, {pipeline_mode = #tpu.pipeline_mode<synchronous>, transform_indices = @transform_6, window_bounds = array<i64: 1, 16>}, {pipeline_mode = #tpu.pipeline_mode<synchronous>, transform_indices = @transform_7, window_bounds = array<i64: 16, 128>}, {pipeline_mode = #tpu.pipeline_mode<synchronous>, transform_indices = @transform_8, window_bounds = array<i64: 1, 128>}, {transform_indices = @transform_9, window_bounds = array<i64: 8, 128>}]} {
    %c0 = arith.constant 0 : index
    %c0_0 = arith.constant 0 : index
    %0 = vector.load %arg1[%c0, %c0_0] : memref<8x256xf32, #tpu.memory_space<vmem>>, vector<8x256xf32>
    %c0_1 = arith.constant 0 : index
    %c0_2 = arith.constant 0 : index
    %1 = vector.load %arg2[%c0_1, %c0_2] : memref<256x64xf32, #tpu.memory_space<vmem>>, vector<256x64xf32>
    %cst = arith.constant dense<0.000000e+00> : vector<8x64xf32>
    %2 = tpu.matmul %0, %1, %cst {dimension_numbers = #tpu.dot_dimension_numbers<[1], [0], [0], [1], [0, 0, 1, 1], [], []>} : vector<8x256xf32>, vector<256x64xf32>, vector<8x64xf32> -> vector<8x64xf32>
    %c0_3 = arith.constant 0 : index
    %c0_4 = arith.constant 0 : index
    %3 = vector.load %arg3[%c0_3, %c0_4] : memref<1x64xf32, #tpu.memory_space<vmem>>, vector<1x64xf32>
    %4 = vector.broadcast %3 : vector<1x64xf32> to vector<8x64xf32>
    %5 = arith.addf %2, %4 : vector<8x64xf32>
    %cst_5 = arith.constant 0.000000e+00 : f32
    %6 = vector.broadcast %cst_5 : f32 to vector<8x64xf32>
    %7 = arith.maximumf %5, %6 : vector<8x64xf32>
    %c0_6 = arith.constant 0 : index
    %c0_7 = arith.constant 0 : index
    %8 = vector.load %arg4[%c0_6, %c0_7] : memref<64x32xf32, #tpu.memory_space<vmem>>, vector<64x32xf32>
    %cst_8 = arith.constant dense<0.000000e+00> : vector<8x32xf32>
    %9 = tpu.matmul %7, %8, %cst_8 {dimension_numbers = #tpu.dot_dimension_numbers<[1], [0], [0], [1], [0, 0, 1, 1], [], []>} : vector<8x64xf32>, vector<64x32xf32>, vector<8x32xf32> -> vector<8x32xf32>
    %c0_9 = arith.constant 0 : index
    %c0_10 = arith.constant 0 : index
    %10 = vector.load %arg5[%c0_9, %c0_10] : memref<1x32xf32, #tpu.memory_space<vmem>>, vector<1x32xf32>
    %11 = vector.broadcast %10 : vector<1x32xf32> to vector<8x32xf32>
    %12 = arith.addf %9, %11 : vector<8x32xf32>
    %cst_11 = arith.constant 0.000000e+00 : f32
    %13 = vector.broadcast %cst_11 : f32 to vector<8x32xf32>
    %14 = arith.maximumf %12, %13 : vector<8x32xf32>
    %c0_12 = arith.constant 0 : index
    %c0_13 = arith.constant 0 : index
    %15 = vector.load %arg6[%c0_12, %c0_13] : memref<32x16xf32, #tpu.memory_space<vmem>>, vector<32x16xf32>
    %cst_14 = arith.constant dense<0.000000e+00> : vector<8x16xf32>
    %16 = tpu.matmul %14, %15, %cst_14 {dimension_numbers = #tpu.dot_dimension_numbers<[1], [0], [0], [1], [0, 0, 1, 1], [], []>} : vector<8x32xf32>, vector<32x16xf32>, vector<8x16xf32> -> vector<8x16xf32>
    %c0_15 = arith.constant 0 : index
    %c0_16 = arith.constant 0 : index
    %17 = vector.load %arg7[%c0_15, %c0_16] : memref<1x16xf32, #tpu.memory_space<vmem>>, vector<1x16xf32>
    %18 = vector.broadcast %17 : vector<1x16xf32> to vector<8x16xf32>
    %19 = arith.addf %16, %18 : vector<8x16xf32>
    %cst_17 = arith.constant 0.000000e+00 : f32
    %20 = vector.broadcast %cst_17 : f32 to vector<8x16xf32>
    %21 = arith.maximumf %19, %20 : vector<8x16xf32>
    %c0_18 = arith.constant 0 : index
    %c0_19 = arith.constant 0 : index
    %22 = vector.load %arg8[%c0_18, %c0_19] : memref<16x128xf32, #tpu.memory_space<vmem>>, vector<16x128xf32>
    %cst_20 = arith.constant dense<0.000000e+00> : vector<8x128xf32>
    %23 = tpu.matmul %21, %22, %cst_20 {dimension_numbers = #tpu.dot_dimension_numbers<[1], [0], [0], [1], [0, 0, 1, 1], [], []>} : vector<8x16xf32>, vector<16x128xf32>, vector<8x128xf32> -> vector<8x128xf32>
    %c0_21 = arith.constant 0 : index
    %c0_22 = arith.constant 0 : index
    %24 = vector.load %arg9[%c0_21, %c0_22] : memref<1x128xf32, #tpu.memory_space<vmem>>, vector<1x128xf32>
    %25 = vector.broadcast %24 : vector<1x128xf32> to vector<8x128xf32>
    %26 = arith.addf %23, %25 : vector<8x128xf32>
    %c0_23 = arith.constant 0 : index
    %c0_24 = arith.constant 0 : index
    %27 = vector.load %arg10[%c0_23, %c0_24] : memref<8x128xf32, #tpu.memory_space<vmem>>, vector<8x128xf32>
    tpu.vector_store %arg10[%c0_23, %c0_24], %26 {strides = array<i32>} : memref<8x128xf32, #tpu.memory_space<vmem>>, vector<8x128xf32>,
    return
  }
  func.func @transform_0(%arg0: i32) -> (i32, i32) {
    %c0_i32 = arith.constant 0 : i32
    %c0_i32_0 = arith.constant 0 : i32
    return %arg0, %c0_i32 : i32, i32
  }
  func.func @transform_1(%arg0: i32) -> (i32, i32) {
    %c0_i32 = arith.constant 0 : i32
    %c0_i32_0 = arith.constant 0 : i32
    %c0_i32_1 = arith.constant 0 : i32
    return %c0_i32, %c0_i32_0 : i32, i32
  }
  func.func @transform_2(%arg0: i32) -> (i32, i32) {
    %c0_i32 = arith.constant 0 : i32
    %c0_i32_0 = arith.constant 0 : i32
    %c0_i32_1 = arith.constant 0 : i32
    return %c0_i32, %c0_i32_0 : i32, i32
  }
  func.func @transform_3(%arg0: i32) -> (i32, i32) {
    %c0_i32 = arith.constant 0 : i32
    %c0_i32_0 = arith.constant 0 : i32
    %c0_i32_1 = arith.constant 0 : i32
    return %c0_i32, %c0_i32_0 : i32, i32
  }
  func.func @transform_4(%arg0: i32) -> (i32, i32) {
    %c0_i32 = arith.constant 0 : i32
    %c0_i32_0 = arith.constant 0 : i32
    %c0_i32_1 = arith.constant 0 : i32
    return %c0_i32, %c0_i32_0 : i32, i32
  }
  func.func @transform_5(%arg0: i32) -> (i32, i32) {
    %c0_i32 = arith.constant 0 : i32
    %c0_i32_0 = arith.constant 0 : i32
    %c0_i32_1 = arith.constant 0 : i32
    return %c0_i32, %c0_i32_0 : i32, i32
  }
  func.func @transform_6(%arg0: i32) -> (i32, i32) {
    %c0_i32 = arith.constant 0 : i32
    %c0_i32_0 = arith.constant 0 : i32
    %c0_i32_1 = arith.constant 0 : i32
    return %c0_i32, %c0_i32_0 : i32, i32
  }
  func.func @transform_7(%arg0: i32) -> (i32, i32) {
    %c0_i32 = arith.constant 0 : i32
    %c0_i32_0 = arith.constant 0 : i32
    %c0_i32_1 = arith.constant 0 : i32
    return %c0_i32, %c0_i32_0 : i32, i32
  }
  func.func @transform_8(%arg0: i32) -> (i32, i32) {
    %c0_i32 = arith.constant 0 : i32
    %c0_i32_0 = arith.constant 0 : i32
    %c0_i32_1 = arith.constant 0 : i32
    return %c0_i32, %c0_i32_0 : i32, i32
  }
  func.func @transform_9(%arg0: i32) -> (i32, i32) {
    %c0_i32 = arith.constant 0 : i32
    %c0_i32_0 = arith.constant 0 : i32
    return %arg0, %c0_i32 : i32, i32
  }
}

</mosaic_0001>

<llo_original>
// kernel: dqn_simple_forward.1
$region0: #{dqn_simple_forward.1}
  #allocation0 [shape = 'u32[]', space=smem, size = 0x4, offset = 0x4, fixed_abs, tag = 'smem constant byte address 0x4 - core index']
  #allocation1 [shape = 'u32[144,128]{1,0:T(1,128)}', space=vmem, size = 0x12000, scoped, tag = 'internal scratch']
  %s0 = inlined_call_operand.vmem [shape: f32[8,256], index: 0, kind: input, shape index: {}]
  %s1 = inlined_call_operand.vmem [shape: f32[256,64], index: 1, kind: input, shape index: {}]
  %s2 = inlined_call_operand.vmem [shape: f32[1,64], index: 2, kind: input, shape index: {}]
  %s3 = inlined_call_operand.vmem [shape: f32[64,32], index: 3, kind: input, shape index: {}]
  %s4 = inlined_call_operand.vmem [shape: f32[1,32], index: 4, kind: input, shape index: {}]
  %s5 = inlined_call_operand.vmem [shape: f32[32,16], index: 5, kind: input, shape index: {}]
  %s6 = inlined_call_operand.vmem [shape: f32[1,16], index: 6, kind: input, shape index: {}]
  %s7 = inlined_call_operand.vmem [shape: f32[16,128], index: 7, kind: input, shape index: {}]
  %s8 = inlined_call_operand.vmem [shape: f32[1,128], index: 8, kind: input, shape index: {}]
  %s9 = inlined_call_operand.vmem [shape: f32[8,128], index: 9, kind: output, shape index: {}]
  %s10 = sld [smem:[#allocation0]]
  $region46: #{dqn_simple_forward.1} parent=0
    _
  %s12 = ssub.s32 1, %s10
  %s13 = scalar_select 0, %s12, %s10
  // Predicated region
  $region2: #{dqn_simple_forward.1} parent=0 // pred_check
    _
  $region3: #{dqn_simple_forward.1} parent=0 // pred_check_branch
    %15 = sbr.rel (0) target = $region5
  $region4: #{dqn_simple_forward.1} parent=0 // pred_region
    _
  $region5: #{dqn_simple_forward.1} parent=0 // pred_fallthru
    _
  // Predicated region
  $region6: #{dqn_simple_forward.1} parent=0 // pred_check
    _
  $region7: #{dqn_simple_forward.1} parent=0 // pred_check_branch
    %17 = sbr.rel (0) target = $region9
  $region8: #{dqn_simple_forward.1} parent=0 // pred_region
    _
  $region9: #{dqn_simple_forward.1} parent=0 // pred_fallthru
    _
  // Predicated region
  $region10: #{dqn_simple_forward.1} parent=0 // pred_check
    _
  $region11: #{dqn_simple_forward.1} parent=0 // pred_check_branch
    %19 = sbr.rel (0) target = $region13
  $region12: #{dqn_simple_forward.1} parent=0 // pred_region
    _
  $region13: #{dqn_simple_forward.1} parent=0 // pred_fallthru
    _
  // Predicated region
  $region14: #{dqn_simple_forward.1} parent=0 // pred_check
    _
  $region15: #{dqn_simple_forward.1} parent=0 // pred_check_branch
    %21 = sbr.rel (0) target = $region17
  $region16: #{dqn_simple_forward.1} parent=0 // pred_region
    _
  $region17: #{dqn_simple_forward.1} parent=0 // pred_fallthru
    _
  // Predicated region
  $region18: #{dqn_simple_forward.1} parent=0 // pred_check
    _
  $region19: #{dqn_simple_forward.1} parent=0 // pred_check_branch
    %23 = sbr.rel (0) target = $region21
  $region20: #{dqn_simple_forward.1} parent=0 // pred_region
    _
  $region21: #{dqn_simple_forward.1} parent=0 // pred_fallthru
    _
  // Predicated region
  $region22: #{dqn_simple_forward.1} parent=0 // pred_check
    _
  $region23: #{dqn_simple_forward.1} parent=0 // pred_check_branch
    %25 = sbr.rel (0) target = $region25
  $region24: #{dqn_simple_forward.1} parent=0 // pred_region
    _
  $region25: #{dqn_simple_forward.1} parent=0 // pred_fallthru
    _
  // Predicated region
  $region26: #{dqn_simple_forward.1} parent=0 // pred_check
    _
  $region27: #{dqn_simple_forward.1} parent=0 // pred_check_branch
    %27 = sbr.rel (0) target = $region29
  $region28: #{dqn_simple_forward.1} parent=0 // pred_region
    _
  $region29: #{dqn_simple_forward.1} parent=0 // pred_fallthru
    _
  // Predicated region
  $region30: #{dqn_simple_forward.1} parent=0 // pred_check
    _
  $region31: #{dqn_simple_forward.1} parent=0 // pred_check_branch
    %29 = sbr.rel (0) target = $region33
  $region32: #{dqn_simple_forward.1} parent=0 // pred_region
    _
  $region33: #{dqn_simple_forward.1} parent=0 // pred_fallthru
    _
  // Predicated region
  $region34: #{dqn_simple_forward.1} parent=0 // pred_check
    _
  $region35: #{dqn_simple_forward.1} parent=0 // pred_check_branch
    %31 = sbr.rel (0) target = $region37
  $region36: #{dqn_simple_forward.1} parent=0 // pred_region
    _
  $region37: #{dqn_simple_forward.1} parent=0 // pred_fallthru
    _
  %v32 = vld [vmem:[%s0] sm:$0xff]
  %v33 = vld [vmem:[%s0 + $0x8] sm:$0xff]
  %v34 = vld [vmem:[%s1] sm:$0xff]
  %v35 = vld [vmem:[%s1 + $0x8] sm:$0xff]
  %v36 = vld [vmem:[%s1 + $0x10] sm:$0xff]
  %v37 = vld [vmem:[%s1 + $0x18] sm:$0xff]
  %v38 = vld [vmem:[%s1 + $0x20] sm:$0xff]
  %v39 = vld [vmem:[%s1 + $0x28] sm:$0xff]
  %v40 = vld [vmem:[%s1 + $0x30] sm:$0xff]
  %v41 = vld [vmem:[%s1 + $0x38] sm:$0xff]
  %v42 = vld [vmem:[%s1 + $0x40] sm:$0xff]
  %v43 = vld [vmem:[%s1 + $0x48] sm:$0xff]
  %v44 = vld [vmem:[%s1 + $0x50] sm:$0xff]
  %v45 = vld [vmem:[%s1 + $0x58] sm:$0xff]
  %v46 = vld [vmem:[%s1 + $0x60] sm:$0xff]
  %v47 = vld [vmem:[%s1 + $0x68] sm:$0xff]
  %v48 = vld [vmem:[%s1 + $0x70] sm:$0xff]
  %v49 = vld [vmem:[%s1 + $0x78] sm:$0xff]
  %v50 = vld [vmem:[%s1 + $0x80] sm:$0xff]
  %v51 = vld [vmem:[%s1 + $0x88] sm:$0xff]
  %v52 = vld [vmem:[%s1 + $0x90] sm:$0xff]
  %v53 = vld [vmem:[%s1 + $0x98] sm:$0xff]
  %v54 = vld [vmem:[%s1 + $0xa0] sm:$0xff]
  %v55 = vld [vmem:[%s1 + $0xa8] sm:$0xff]
  %v56 = vld [vmem:[%s1 + $0xb0] sm:$0xff]
  %v57 = vld [vmem:[%s1 + $0xb8] sm:$0xff]
  %v58 = vld [vmem:[%s1 + $0xc0] sm:$0xff]
  %v59 = vld [vmem:[%s1 + $0xc8] sm:$0xff]
  %v60 = vld [vmem:[%s1 + $0xd0] sm:$0xff]
  %v61 = vld [vmem:[%s1 + $0xd8] sm:$0xff]
  %v62 = vld [vmem:[%s1 + $0xe0] sm:$0xff]
  %v63 = vld [vmem:[%s1 + $0xe8] sm:$0xff]
  %v64 = vld [vmem:[%s1 + $0xf0] sm:$0xff]
  %v65 = vld [vmem:[%s1 + $0xf8] sm:$0xff]
  %v66 = vld [vmem:[%s2] sm:$0x1]
  %v68 = vlaneseq
  %v69 = vshrl.u32 %v68, 7
  %v70 = vsub.s32 0, %v69
  %v71 = vrot.slane %v66, %v70
  %73 = vmatprep.subr.mxu0 0.0
  %74 = vmatpush1.msra.mxu0 %v49
  %75 = vmatprep.subr.mxu0 0.0
  %76 = vmatpush1.msra.mxu0 %v48
  %77 = vmatprep.subr.mxu0 0.0
  %78 = vmatpush1.msra.mxu0 %v47
  %79 = vmatprep.subr.mxu0 0.0
  %80 = vmatpush1.msra.mxu0 %v46
  %81 = vmatprep.subr.mxu0 0.0
  %82 = vmatpush1.msra.mxu0 %v45
  %83 = vmatprep.subr.mxu0 0.0
  %84 = vmatpush1.msra.mxu0 %v44
  %85 = vmatprep.subr.mxu0 0.0
  %86 = vmatpush1.msra.mxu0 %v43
  %87 = vmatprep.subr.mxu0 0.0
  %88 = vmatpush1.msra.mxu0 %v42
  %89 = vmatprep.subr.mxu0 0.0
  %90 = vmatpush1.msra.mxu0 %v41
  %91 = vmatprep.subr.mxu0 0.0
  %92 = vmatpush1.msra.mxu0 %v40
  %93 = vmatprep.subr.mxu0 0.0
  %94 = vmatpush1.msra.mxu0 %v39
  %95 = vmatprep.subr.mxu0 0.0
  %96 = vmatpush1.msra.mxu0 %v38
  %97 = vmatprep.subr.mxu0 0.0
  %98 = vmatpush1.msra.mxu0 %v37
  %99 = vmatprep.subr.mxu0 0.0
  %100 = vmatpush1.msra.mxu0 %v36
  %101 = vmatprep.subr.mxu0 0.0
  %102 = vmatpush1.msra.mxu0 %v35
  %103 = vmatprep.subr.mxu0 0.0
  %104 = vmatpush1.msra.mxu0 %v34
  %105 = vmatprep.subr.mxu0 0.0
  %106 = vmatpush2.msra.mxu0 %v65
  %107 = vmatprep.subr.mxu0 0.0
  %108 = vmatpush2.msra.mxu0 %v64
  %109 = vmatprep.subr.mxu0 0.0
  %110 = vmatpush2.msra.mxu0 %v63
  %111 = vmatprep.subr.mxu0 0.0
  %112 = vmatpush2.msra.mxu0 %v62
  %113 = vmatprep.subr.mxu0 0.0
  %114 = vmatpush2.msra.mxu0 %v61
  %115 = vmatprep.subr.mxu0 0.0
  %116 = vmatpush2.msra.mxu0 %v60
  %117 = vmatprep.subr.mxu0 0.0
  %118 = vmatpush2.msra.mxu0 %v59
  %119 = vmatprep.subr.mxu0 0.0
  %120 = vmatpush2.msra.mxu0 %v58
  %121 = vmatprep.subr.mxu0 0.0
  %122 = vmatpush2.msra.mxu0 %v57
  %123 = vmatprep.subr.mxu0 0.0
  %124 = vmatpush2.msra.mxu0 %v56
  %125 = vmatprep.subr.mxu0 0.0
  %126 = vmatpush2.msra.mxu0 %v55
  %127 = vmatprep.subr.mxu0 0.0
  %128 = vmatpush2.msra.mxu0 %v54
  %129 = vmatprep.subr.mxu0 0.0
  %130 = vmatpush2.msra.mxu0 %v53
  %131 = vmatprep.subr.mxu0 0.0
  %132 = vmatpush2.msra.mxu0 %v52
  %133 = vmatprep.subr.mxu0 0.0
  %134 = vmatpush2.msra.mxu0 %v51
  %135 = vmatprep.subr.mxu0 0.0
  %136 = vmatpush2.msra.mxu0 %v50
  %137 = vmatprep.mubr.f32.mxu0 %v33
  %138 = vmatmul.mubr.f32.gmra.mxu0 %v32
  %v139 = vpop.f32.mrf.mxu0
  %v140 = vadd.f32 %v71, %v139
  %v141 = vpop.f32.mrf.mxu0
  %142 = vdwg.mxu0
  %v143 = vmax.f32 %v140, 0.0
  %v144 = vld [vmem:[%s3] sm:$0xff]
  %v145 = vld [vmem:[%s3 + $0x8] sm:$0xff]
  %v146 = vld [vmem:[%s3 + $0x10] sm:$0xff]
  %v147 = vld [vmem:[%s3 + $0x18] sm:$0xff]
  %v148 = vld [vmem:[%s3 + $0x20] sm:$0xff]
  %v149 = vld [vmem:[%s3 + $0x28] sm:$0xff]
  %v150 = vld [vmem:[%s3 + $0x30] sm:$0xff]
  %v151 = vld [vmem:[%s3 + $0x38] sm:$0xff]
  %v152 = vld [vmem:[%s4] sm:$0x1]
  %v154 = vlaneseq
  %v155 = vshrl.u32 %v154, 7
  %v156 = vsub.s32 0, %v155
  %v157 = vrot.slane %v152, %v156
  %vm159 = vcmask 523264
  %v161 = vsel %vm159, %v143, 0
  %163 = vmatprep.subr.mxu0 0.0
  %164 = vmatpush1.msra.mxu0 0.0
  %165 = vmatprep.subr.mxu0 0.0
  %166 = vmatpush1.msra.mxu0 0.0
  %167 = vmatprep.subr.mxu0 0.0
  %168 = vmatpush1.msra.mxu0 0.0
  %169 = vmatprep.subr.mxu0 0.0
  %170 = vmatpush1.msra.mxu0 0.0
  %171 = vmatprep.subr.mxu0 0.0
  %172 = vmatpush1.msra.mxu0 0.0
  %173 = vmatprep.subr.mxu0 0.0
  %174 = vmatpush1.msra.mxu0 0.0
  %175 = vmatprep.subr.mxu0 0.0
  %176 = vmatpush1.msra.mxu0 0.0
  %177 = vmatprep.subr.mxu0 0.0
  %178 = vmatpush1.msra.mxu0 0.0
  %179 = vmatprep.subr.mxu0 0.0
  %180 = vmatpush1.msra.mxu0 %v151
  %181 = vmatprep.subr.mxu0 0.0
  %182 = vmatpush1.msra.mxu0 %v150
  %183 = vmatprep.subr.mxu0 0.0
  %184 = vmatpush1.msra.mxu0 %v149
  %185 = vmatprep.subr.mxu0 0.0
  %186 = vmatpush1.msra.mxu0 %v148
  %187 = vmatprep.subr.mxu0 0.0
  %188 = vmatpush1.msra.mxu0 %v147
  %189 = vmatprep.subr.mxu0 0.0
  %190 = vmatpush1.msra.mxu0 %v146
  %191 = vmatprep.subr.mxu0 0.0
  %192 = vmatpush1.msra.mxu0 %v145
  %193 = vmatprep.subr.mxu0 0.0
  %194 = vmatpush1.msra.mxu0 %v144
  %195 = vmatprep.subr.mxu0 0.0
  %196 = vmatpush2.msra.mxu0 0.0
  %197 = vmatprep.subr.mxu0 0.0
  %198 = vmatpush2.msra.mxu0 0.0
  %199 = vmatprep.subr.mxu0 0.0
  %200 = vmatpush2.msra.mxu0 0.0
  %201 = vmatprep.subr.mxu0 0.0
  %202 = vmatpush2.msra.mxu0 0.0
  %203 = vmatprep.subr.mxu0 0.0
  %204 = vmatpush2.msra.mxu0 0.0
  %205 = vmatprep.subr.mxu0 0.0
  %206 = vmatpush2.msra.mxu0 0.0
  %207 = vmatprep.subr.mxu0 0.0
  %208 = vmatpush2.msra.mxu0 0.0
  %209 = vmatprep.subr.mxu0 0.0
  %210 = vmatpush2.msra.mxu0 0.0
  %211 = vmatprep.subr.mxu0 0.0
  %212 = vmatpush2.msra.mxu0 0.0
  %213 = vmatprep.subr.mxu0 0.0
  %214 = vmatpush2.msra.mxu0 0.0
  %215 = vmatprep.subr.mxu0 0.0
  %216 = vmatpush2.msra.mxu0 0.0
  %217 = vmatprep.subr.mxu0 0.0
  %218 = vmatpush2.msra.mxu0 0.0
  %219 = vmatprep.subr.mxu0 0.0
  %220 = vmatpush2.msra.mxu0 0.0
  %221 = vmatprep.subr.mxu0 0.0
  %222 = vmatpush2.msra.mxu0 0.0
  %223 = vmatprep.subr.mxu0 0.0
  %224 = vmatpush2.msra.mxu0 0.0
  %225 = vmatprep.subr.mxu0 0.0
  %226 = vmatpush2.msra.mxu0 0.0
  %227 = vmatprep.mubr.f32.mxu0 0.0
  %228 = vmatmul.mubr.f32.gmra.mxu0 %v161
  %v229 = vpop.f32.mrf.mxu0
  %v230 = vadd.f32 %v157, %v229
  %v231 = vpop.f32.mrf.mxu0
  %232 = vdwg.mxu0
  %v233 = vmax.f32 %v230, 0.0
  %v234 = vld [vmem:[%s5] sm:$0xff]
  %v235 = vld [vmem:[%s5 + $0x8] sm:$0xff]
  %v236 = vld [vmem:[%s5 + $0x10] sm:$0xff]
  %v237 = vld [vmem:[%s5 + $0x18] sm:$0xff]
  %v238 = vld [vmem:[%s6] sm:$0x1]
  %v240 = vlaneseq
  %v241 = vshrl.u32 %v240, 7
  %v242 = vsub.s32 0, %v241
  %v243 = vrot.slane %v238, %v242
  %vm245 = vcmask 261120
  %v247 = vsel %vm245, %v233, 0
  %249 = vmatprep.subr.mxu0 0.0
  %250 = vmatpush1.msra.mxu0 0.0
  %251 = vmatprep.subr.mxu0 0.0
  %252 = vmatpush1.msra.mxu0 0.0
  %253 = vmatprep.subr.mxu0 0.0
  %254 = vmatpush1.msra.mxu0 0.0
  %255 = vmatprep.subr.mxu0 0.0
  %256 = vmatpush1.msra.mxu0 0.0
  %257 = vmatprep.subr.mxu0 0.0
  %258 = vmatpush1.msra.mxu0 0.0
  %259 = vmatprep.subr.mxu0 0.0
  %260 = vmatpush1.msra.mxu0 0.0
  %261 = vmatprep.subr.mxu0 0.0
  %262 = vmatpush1.msra.mxu0 0.0
  %263 = vmatprep.subr.mxu0 0.0
  %264 = vmatpush1.msra.mxu0 0.0
  %265 = vmatprep.subr.mxu0 0.0
  %266 = vmatpush1.msra.mxu0 0.0
  %267 = vmatprep.subr.mxu0 0.0
  %268 = vmatpush1.msra.mxu0 0.0
  %269 = vmatprep.subr.mxu0 0.0
  %270 = vmatpush1.msra.mxu0 0.0
  %271 = vmatprep.subr.mxu0 0.0
  %272 = vmatpush1.msra.mxu0 0.0
  %273 = vmatprep.subr.mxu0 0.0
  %274 = vmatpush1.msra.mxu0 %v237
  %275 = vmatprep.subr.mxu0 0.0
  %276 = vmatpush1.msra.mxu0 %v236
  %277 = vmatprep.subr.mxu0 0.0
  %278 = vmatpush1.msra.mxu0 %v235
  %279 = vmatprep.subr.mxu0 0.0
  %280 = vmatpush1.msra.mxu0 %v234
  %281 = vmatprep.subr.mxu0 0.0
  %282 = vmatpush2.msra.mxu0 0.0
  %283 = vmatprep.subr.mxu0 0.0
  %284 = vmatpush2.msra.mxu0 0.0
  %285 = vmatprep.subr.mxu0 0.0
  %286 = vmatpush2.msra.mxu0 0.0
  %287 = vmatprep.subr.mxu0 0.0
  %288 = vmatpush2.msra.mxu0 0.0
  %289 = vmatprep.subr.mxu0 0.0
  %290 = vmatpush2.msra.mxu0 0.0
  %291 = vmatprep.subr.mxu0 0.0
  %292 = vmatpush2.msra.mxu0 0.0
  %293 = vmatprep.subr.mxu0 0.0
  %294 = vmatpush2.msra.mxu0 0.0
  %295 = vmatprep.subr.mxu0 0.0
  %296 = vmatpush2.msra.mxu0 0.0
  %297 = vmatprep.subr.mxu0 0.0
  %298 = vmatpush2.msra.mxu0 0.0
  %299 = vmatprep.subr.mxu0 0.0
  %300 = vmatpush2.msra.mxu0 0.0
  %301 = vmatprep.subr.mxu0 0.0
  %302 = vmatpush2.msra.mxu0 0.0
  %303 = vmatprep.subr.mxu0 0.0
  %304 = vmatpush2.msra.mxu0 0.0
  %305 = vmatprep.subr.mxu0 0.0
  %306 = vmatpush2.msra.mxu0 0.0
  %307 = vmatprep.subr.mxu0 0.0
  %308 = vmatpush2.msra.mxu0 0.0
  %309 = vmatprep.subr.mxu0 0.0
  %310 = vmatpush2.msra.mxu0 0.0
  %311 = vmatprep.subr.mxu0 0.0
  %312 = vmatpush2.msra.mxu0 0.0
  %313 = vmatprep.mubr.f32.mxu0 0.0
  %314 = vmatmul.mubr.f32.gmra.mxu0 %v247
  %v315 = vpop.f32.mrf.mxu0
  %v316 = vadd.f32 %v243, %v315
  %v317 = vpop.f32.mrf.mxu0
  %318 = vdwg.mxu0
  %v319 = vmax.f32 %v316, 0.0
  %v320 = vld [vmem:[%s7] sm:$0xff]
  %v321 = vld [vmem:[%s7 + $0x8] sm:$0xff]
  %v322 = vld [vmem:[%s8] sm:$0x1]
  %v324 = vlaneseq
  %v325 = vshrl.u32 %v324, 7
  %v326 = vsub.s32 0, %v325
  %v327 = vrot.slane %v322, %v326
  %vm329 = vcmask 130048
  %v331 = vsel %vm329, %v319, 0
  %333 = vmatprep.subr.mxu0 0.0
  %334 = vmatpush1.msra.mxu0 0.0
  %335 = vmatprep.subr.mxu0 0.0
  %336 = vmatpush1.msra.mxu0 0.0
  %337 = vmatprep.subr.mxu0 0.0
  %338 = vmatpush1.msra.mxu0 0.0
  %339 = vmatprep.subr.mxu0 0.0
  %340 = vmatpush1.msra.mxu0 0.0
  %341 = vmatprep.subr.mxu0 0.0
  %342 = vmatpush1.msra.mxu0 0.0
  %343 = vmatprep.subr.mxu0 0.0
  %344 = vmatpush1.msra.mxu0 0.0
  %345 = vmatprep.subr.mxu0 0.0
  %346 = vmatpush1.msra.mxu0 0.0
  %347 = vmatprep.subr.mxu0 0.0
  %348 = vmatpush1.msra.mxu0 0.0
  %349 = vmatprep.subr.mxu0 0.0
  %350 = vmatpush1.msra.mxu0 0.0
  %351 = vmatprep.subr.mxu0 0.0
  %352 = vmatpush1.msra.mxu0 0.0
  %353 = vmatprep.subr.mxu0 0.0
  %354 = vmatpush1.msra.mxu0 0.0
  %355 = vmatprep.subr.mxu0 0.0
  %356 = vmatpush1.msra.mxu0 0.0
  %357 = vmatprep.subr.mxu0 0.0
  %358 = vmatpush1.msra.mxu0 0.0
  %359 = vmatprep.subr.mxu0 0.0
  %360 = vmatpush1.msra.mxu0 0.0
  %361 = vmatprep.subr.mxu0 0.0
  %362 = vmatpush1.msra.mxu0 %v321
  %363 = vmatprep.subr.mxu0 0.0
  %364 = vmatpush1.msra.mxu0 %v320
  %365 = vmatprep.subr.mxu0 0.0
  %366 = vmatpush2.msra.mxu0 0.0
  %367 = vmatprep.subr.mxu0 0.0
  %368 = vmatpush2.msra.mxu0 0.0
  %369 = vmatprep.subr.mxu0 0.0
  %370 = vmatpush2.msra.mxu0 0.0
  %371 = vmatprep.subr.mxu0 0.0
  %372 = vmatpush2.msra.mxu0 0.0
  %373 = vmatprep.subr.mxu0 0.0
  %374 = vmatpush2.msra.mxu0 0.0
  %375 = vmatprep.subr.mxu0 0.0
  %376 = vmatpush2.msra.mxu0 0.0
  %377 = vmatprep.subr.mxu0 0.0
  %378 = vmatpush2.msra.mxu0 0.0
  %379 = vmatprep.subr.mxu0 0.0
  %380 = vmatpush2.msra.mxu0 0.0
  %381 = vmatprep.subr.mxu0 0.0
  %382 = vmatpush2.msra.mxu0 0.0
  %383 = vmatprep.subr.mxu0 0.0
  %384 = vmatpush2.msra.mxu0 0.0
  %385 = vmatprep.subr.mxu0 0.0
  %386 = vmatpush2.msra.mxu0 0.0
  %387 = vmatprep.subr.mxu0 0.0
  %388 = vmatpush2.msra.mxu0 0.0
  %389 = vmatprep.subr.mxu0 0.0
  %390 = vmatpush2.msra.mxu0 0.0
  %391 = vmatprep.subr.mxu0 0.0
  %392 = vmatpush2.msra.mxu0 0.0
  %393 = vmatprep.subr.mxu0 0.0
  %394 = vmatpush2.msra.mxu0 0.0
  %395 = vmatprep.subr.mxu0 0.0
  %396 = vmatpush2.msra.mxu0 0.0
  %397 = vmatprep.mubr.f32.mxu0 0.0
  %398 = vmatmul.mubr.f32.gmra.mxu0 %v331
  %v399 = vpop.f32.mrf.mxu0
  %v400 = vadd.f32 %v327, %v399
  %v401 = vpop.f32.mrf.mxu0
  %402 = vdwg.mxu0
  %403 = vst [vmem:[%s9] sm:$0xff] %v400
  // Predicated region
  $region38: #{dqn_simple_forward.1} parent=0 // pred_check
    _
  $region39: #{dqn_simple_forward.1} parent=0 // pred_check_branch
    %405 = sbr.rel (0) target = $region41
  $region40: #{dqn_simple_forward.1} parent=0 // pred_region
    _
  $region41: #{dqn_simple_forward.1} parent=0 // pred_fallthru
    _
  // Predicated region
  $region42: #{dqn_simple_forward.1} parent=0 // pred_check
    _
  $region43: #{dqn_simple_forward.1} parent=0 // pred_check_branch
    %407 = sbr.rel (0) target = $region45
  $region44: #{dqn_simple_forward.1} parent=0 // pred_region
    _
  $region45: #{dqn_simple_forward.1} parent=0 // pred_fallthru
    _

</llo_original>
